<compile_context>
chip_gen: v7x
topology: tpu7x:2x2x1
jax: 0.10.0
libtpu: 0.0.40
codegen_flags: <defaults>
</compile_context>

<pallas_src>
import math
from functools import partial

import jax
import jax.numpy as jnp
from jax.experimental import pallas as pl
from jax.experimental.pallas import tpu as pltpu


IN_FEATURES = 16
OUT_FEATURES = 10
PACK = 8                       # original rows packed into one lane-dense row
PACKED_IN = PACK * IN_FEATURES     # 128 (full f32 lane width)
PACKED_OUT = PACK * OUT_FEATURES   # 80

DEFAULT_TILE_P = 4096          # packed rows / grid step (= 32768 original rows)
MAX_TILE_P = 8192              # ~13 MiB double-buffered x+out, under 32 MiB scoped VMEM
PALLAS_MIN_BATCH = 8192        # below this XLA's fused matmul wins (prologue-bound)


def linear_kernel(x_ref, w_ref, b_ref, o_ref):
    # One MXU matmul per batch tile + broadcast bias add, all in VMEM.
    # Block-diag weight (128,80) and bias (1,80) stay VMEM-resident across grid
    # steps (constant index_maps); only x / out tiles stream through HBM.
    o_ref[...] = (
        jnp.dot(x_ref[...], w_ref[...], preferred_element_type=jnp.float32)
        + b_ref[...]
    ).astype(o_ref.dtype)


def _per_forward_pallas(x, w_bd, b_packed, tile_p):
    """Lane-dense, batch-tiled Pallas linear.

    x: (B, 16) with B % 8 == 0; w_bd: (128, 80) block-diagonal; b_packed: (1, 80).
    """
    B = x.shape[0]
    P = B // PACK

    # Free contiguous (row-major) reshape: 8 original rows per lane-dense row.
    xp = x.reshape(P, PACKED_IN)

    # Tile clamping: multiple of 8, bounded by the VMEM budget, and at least two
    # grid steps whenever possible so the "parallel" axis spans both v7x cores.
    tile_p = max(8, (min(int(tile_p), MAX_TILE_P) // 8) * 8)
    half_p = ((((P + 1) // 2) + 7) // 8) * 8
    tile_p = min(tile_p, max(8, half_p))
    grid = ((P + tile_p - 1) // tile_p,)   # ragged last block handled by Pallas

    cost = pl.CostEstimate(
        flops=2 * P * PACKED_IN * PACKED_OUT,
        transcendentals=0,
        bytes_accessed=4 * (P * (PACKED_IN + PACKED_OUT) + w_bd.size + b_packed.size),
    )

    out = pl.pallas_call(
        linear_kernel,
        out_shape=jax.ShapeDtypeStruct((P, PACKED_OUT), jnp.float32),
        grid=grid,
        in_specs=[
            # Streamed lane-dense batch tile of x.
            pl.BlockSpec((tile_p, PACKED_IN), lambda i: (i, 0)),
            # Weight and bias: same block every step -> resident in VMEM.
            pl.BlockSpec((PACKED_IN, PACKED_OUT), lambda i: (0, 0)),
            pl.BlockSpec((1, PACKED_OUT), lambda i: (0, 0)),
        ],
        out_specs=pl.BlockSpec((tile_p, PACKED_OUT), lambda i: (i, 0)),
        compiler_params=pltpu.CompilerParams(
            # Batch axis is embarrassingly parallel -> shard across both
            # TensorCores on v7x; harmless on v5e/v6e.
            dimension_semantics=("parallel",),
            # Explicit headroom (safe on all gens; v7x physical VMEM is 64 MiB).
            vmem_limit_bytes=32 * 1024 * 1024,
        ),
        cost_estimate=cost,
    )(xp, w_bd, b_packed)

    # Free contiguous reshape back to the logical (B, 10) layout.
    return out.reshape(B, OUT_FEATURES)


@partial(jax.jit, static_argnames=("tile_p", "force_pallas"))
def per_forward(x, w_bd, b_packed, *, tile_p=DEFAULT_TILE_P, force_pallas=False):
    """Forward pass of `per` (nn.Linear(16, 10)).

    Args:
      x:        (B, 16) float32
      w_bd:     (128, 80) float32 block-diagonal packed weight (see pack_params)
      b_packed: (1, 80)  float32 tiled bias
    Returns:
      (B, 10) float32
    """
    B = x.shape[0]
    use_pallas = (force_pallas or B >= PALLAS_MIN_BATCH) and (B % PACK == 0)
    if not use_pallas:
        # Small / ragged batches: XLA's fused matmul matches or beats a 1-step
        # Pallas grid (pipeline prologue dominated).  The logical W^T / b are
        # the first diagonal block of the packed params (tiny static slice).
        w_t = w_bd[:IN_FEATURES, :OUT_FEATURES]
        b2d = b_packed[:, :OUT_FEATURES]
        return x @ w_t + b2d
    return _per_forward_pallas(x, w_bd, b_packed, tile_p)


def init_params(key, in_features=IN_FEATURES, out_features=OUT_FEATURES):
    """Mirrors per.weight_init(): kaiming_uniform_ on weight, bias = 0.

    Returns PyTorch-layout weight (out, in) and bias (out,).
    """
    bound = math.sqrt(6.0 / in_features)  # kaiming_uniform_(a=0), fan_in mode
    weight = jax.random.uniform(
        key, (out_features, in_features), jnp.float32, minval=-bound, maxval=bound
    )
    bias = jnp.zeros((out_features,), jnp.float32)
    return weight, bias


def pack_params(weight, bias, pack=PACK):
    """One-time (hoisted) lane-dense packing of the Linear parameters.

    weight: (out, in) PyTorch layout; bias: (out,).
    Returns:
      w_bd:     (pack*in, pack*out) block-diagonal matrix of W^T copies
      b_packed: (1, pack*out) tiled bias
    """
    w_t = weight.T.astype(jnp.float32)                         # (16, 10)
    w_bd = jnp.kron(jnp.eye(pack, dtype=jnp.float32), w_t)     # (128, 80)
    b_packed = jnp.tile(bias.astype(jnp.float32), pack).reshape(1, pack * bias.shape[0])
    return w_bd, b_packed


if __name__ == "__main__":
    key = jax.random.PRNGKey(0)
    k_w, k_x1, k_x2, k_x3 = jax.random.split(key, 4)

    weight, bias = init_params(k_w)
    w_bd, b_packed = pack_params(weight, bias)   # hoisted: no per-call layout glue
    w_t = weight.T
    b2d = bias.reshape(1, OUT_FEATURES)

    # --- Test 1: small batch, single (partial) packed block, forced through
    # the Pallas path so the kernel itself is exercised. ---------------------
    B1 = 40  # P = 5 packed rows < tile_p=8 -> masked final-block writeback
    x1 = jax.random.normal(k_x1, (B1, IN_FEATURES), jnp.float32)
    out1 = jax.block_until_ready(
        per_forward(x1, w_bd, b_packed, tile_p=8, force_pallas=True)
    )
    ref1 = x1 @ w_t + b2d
    assert out1.shape == (B1, OUT_FEATURES)
    assert jnp.allclose(out1, ref1, atol=1e-5, rtol=1e-5)

    # --- Test 2: multi-step grid (resident weight/bias, double-buffered x/out)
    # with a ragged final block -- no wrapper pad or output slice. -----------
    B2 = 1096  # P = 137 packed rows, tile_p=16 -> 9 grid steps, last block ragged
    x2 = jax.random.normal(k_x2, (B2, IN_FEATURES), jnp.float32)
    out2 = jax.block_until_ready(
        per_forward(x2, w_bd, b_packed, tile_p=16, force_pallas=True)
    )
    ref2 = x2 @ w_t + b2d
    assert out2.shape == (B2, OUT_FEATURES)
    assert jnp.allclose(out2, ref2, atol=1e-5, rtol=1e-5)

    # --- Test 3: tiny / non-multiple-of-8 batch takes the XLA fallback path. -
    # TODO(synk): large batches with B % 8 != 0 also use the XLA fallback
    # (avoids hidden pad/slice HBM copies); split prefix/tail if that matters.
    B3 = 6
    x3 = jax.random.normal(k_x3, (B3, IN_FEATURES), jnp.float32)
    out3 = jax.block_until_ready(per_forward(x3, w_bd, b_packed))
    ref3 = x3 @ w_t + b2d
    assert out3.shape == (B3, OUT_FEATURES)
    assert jnp.allclose(out3, ref3, atol=1e-5, rtol=1e-5)

    print("KERNEL_OK")
</pallas_src>

<mosaic_0001>
module attributes {stable_mosaic.version = 11 : i64} {
  func.func @linear_kernel(%arg0: i32, %arg1: memref<8x128xf32, #tpu.memory_space<vmem>>, %arg2: memref<128x80xf32, #tpu.memory_space<vmem>>, %arg3: memref<1x80xf32, #tpu.memory_space<vmem>>, %arg4: memref<8x80xf32, #tpu.memory_space<vmem>>) attributes {dimension_semantics = [#tpu.dimension_semantics<parallel>], iteration_bounds = array<i64: 1>, scalar_prefetch = 0 : i64, scratch_operands = 0 : i64, tpu.core_type = #tpu.core_type<tc>, window_params = [{transform_indices = @transform_0, window_bounds = array<i64: 8, 128>}, {pipeline_mode = #tpu.pipeline_mode<synchronous>, transform_indices = @transform_1, window_bounds = array<i64: 128, 80>}, {pipeline_mode = #tpu.pipeline_mode<synchronous>, transform_indices = @transform_2, window_bounds = array<i64: 1, 80>}, {transform_indices = @transform_3, window_bounds = array<i64: 8, 80>}]} {
    %c0 = arith.constant 0 : index
    %c0_0 = arith.constant 0 : index
    %0 = vector.load %arg1[%c0, %c0_0] : memref<8x128xf32, #tpu.memory_space<vmem>>, vector<8x128xf32>
    %c0_1 = arith.constant 0 : index
    %c0_2 = arith.constant 0 : index
    %1 = vector.load %arg2[%c0_1, %c0_2] : memref<128x80xf32, #tpu.memory_space<vmem>>, vector<128x80xf32>
    %cst = arith.constant dense<0.000000e+00> : vector<8x80xf32>
    %2 = tpu.matmul %0, %1, %cst {dimension_numbers = #tpu.dot_dimension_numbers<[1], [0], [0], [1], [0, 0, 1, 1], [], []>} : vector<8x128xf32>, vector<128x80xf32>, vector<8x80xf32> -> vector<8x80xf32>
    %c0_3 = arith.constant 0 : index
    %c0_4 = arith.constant 0 : index
    %3 = vector.load %arg3[%c0_3, %c0_4] : memref<1x80xf32, #tpu.memory_space<vmem>>, vector<1x80xf32>
    %4 = vector.broadcast %3 : vector<1x80xf32> to vector<8x80xf32>
    %5 = arith.addf %2, %4 : vector<8x80xf32>
    %c0_5 = arith.constant 0 : index
    %c0_6 = arith.constant 0 : index
    %6 = vector.load %arg4[%c0_5, %c0_6] : memref<8x80xf32, #tpu.memory_space<vmem>>, vector<8x80xf32>
    tpu.vector_store %arg4[%c0_5, %c0_6], %5 {strides = array<i32>} : memref<8x80xf32, #tpu.memory_space<vmem>>, vector<8x80xf32>,
    return
  }
  func.func @transform_0(%arg0: i32) -> (i32, i32) {
    %c0_i32 = arith.constant 0 : i32
    %c0_i32_0 = arith.constant 0 : i32
    return %arg0, %c0_i32 : i32, i32
  }
  func.func @transform_1(%arg0: i32) -> (i32, i32) {
    %c0_i32 = arith.constant 0 : i32
    %c0_i32_0 = arith.constant 0 : i32
    %c0_i32_1 = arith.constant 0 : i32
    return %c0_i32, %c0_i32_0 : i32, i32
  }
  func.func @transform_2(%arg0: i32) -> (i32, i32) {
    %c0_i32 = arith.constant 0 : i32
    %c0_i32_0 = arith.constant 0 : i32
    %c0_i32_1 = arith.constant 0 : i32
    return %c0_i32, %c0_i32_0 : i32, i32
  }
  func.func @transform_3(%arg0: i32) -> (i32, i32) {
    %c0_i32 = arith.constant 0 : i32
    %c0_i32_0 = arith.constant 0 : i32
    return %arg0, %c0_i32 : i32, i32
  }
}

</mosaic_0001>

<llo_original>
// kernel: per_forward.1
$region0: #{per_forward.1}
  #allocation0 [shape = 'u32[]', space=smem, size = 0x4, offset = 0x4, fixed_abs, tag = 'smem constant byte address 0x4 - core index']
  #allocation1 [shape = 'u32[144,128]{1,0:T(1,128)}', space=vmem, size = 0x12000, scoped, tag = 'internal scratch']
  %s0 = inlined_call_operand.vmem [shape: f32[5,128], index: 0, kind: input, shape index: {}]
  %s1 = inlined_call_operand.vmem [shape: f32[128,80], index: 1, kind: input, shape index: {}]
  %s2 = inlined_call_operand.vmem [shape: f32[1,80], index: 2, kind: input, shape index: {}]
  %s3 = inlined_call_operand.vmem [shape: f32[5,80], index: 3, kind: output, shape index: {}]
  %s4 = sld [smem:[#allocation0]]
  $region22: #{per_forward.1} parent=0
    _
  %s6 = ssub.s32 1, %s4
  %s7 = scalar_select 0, %s6, %s4
  // Predicated region
  $region2: #{per_forward.1} parent=0 // pred_check
    _
  $region3: #{per_forward.1} parent=0 // pred_check_branch
    %9 = sbr.rel (0) target = $region5
  $region4: #{per_forward.1} parent=0 // pred_region
    _
  $region5: #{per_forward.1} parent=0 // pred_fallthru
    _
  // Predicated region
  $region6: #{per_forward.1} parent=0 // pred_check
    _
  $region7: #{per_forward.1} parent=0 // pred_check_branch
    %11 = sbr.rel (0) target = $region9
  $region8: #{per_forward.1} parent=0 // pred_region
    _
  $region9: #{per_forward.1} parent=0 // pred_fallthru
    _
  // Predicated region
  $region10: #{per_forward.1} parent=0 // pred_check
    _
  $region11: #{per_forward.1} parent=0 // pred_check_branch
    %13 = sbr.rel (0) target = $region13
  $region12: #{per_forward.1} parent=0 // pred_region
    _
  $region13: #{per_forward.1} parent=0 // pred_fallthru
    _
  %v14 = vld [vmem:[%s0] sm:$0xff]
  %v15 = vld [vmem:[%s1] sm:$0xff]
  %v16 = vld [vmem:[%s1 + $0x8] sm:$0xff]
  %v17 = vld [vmem:[%s1 + $0x10] sm:$0xff]
  %v18 = vld [vmem:[%s1 + $0x18] sm:$0xff]
  %v19 = vld [vmem:[%s1 + $0x20] sm:$0xff]
  %v20 = vld [vmem:[%s1 + $0x28] sm:$0xff]
  %v21 = vld [vmem:[%s1 + $0x30] sm:$0xff]
  %v22 = vld [vmem:[%s1 + $0x38] sm:$0xff]
  %v23 = vld [vmem:[%s1 + $0x40] sm:$0xff]
  %v24 = vld [vmem:[%s1 + $0x48] sm:$0xff]
  %v25 = vld [vmem:[%s1 + $0x50] sm:$0xff]
  %v26 = vld [vmem:[%s1 + $0x58] sm:$0xff]
  %v27 = vld [vmem:[%s1 + $0x60] sm:$0xff]
  %v28 = vld [vmem:[%s1 + $0x68] sm:$0xff]
  %v29 = vld [vmem:[%s1 + $0x70] sm:$0xff]
  %v30 = vld [vmem:[%s1 + $0x78] sm:$0xff]
  %v31 = vld [vmem:[%s2] sm:$0x1]
  %v33 = vlaneseq
  %v34 = vshrl.u32 %v33, 7
  %v35 = vsub.s32 0, %v34
  %v36 = vrot.slane %v31, %v35
  %38 = vmatprep.subr.mxu0 0.0
  %39 = vmatpush1.msra.mxu0 %v15
  %40 = vmatprep.subr.mxu0 0.0
  %41 = vmatpush1.msra.mxu0 %v16
  %42 = vmatprep.subr.mxu0 0.0
  %43 = vmatpush1.msra.mxu0 %v17
  %44 = vmatprep.subr.mxu0 0.0
  %45 = vmatpush1.msra.mxu0 %v18
  %46 = vmatprep.subr.mxu0 0.0
  %47 = vmatpush1.msra.mxu0 %v19
  %48 = vmatprep.subr.mxu0 0.0
  %49 = vmatpush1.msra.mxu0 %v20
  %50 = vmatprep.subr.mxu0 0.0
  %51 = vmatpush1.msra.mxu0 %v21
  %52 = vmatprep.subr.mxu0 0.0
  %53 = vmatpush1.msra.mxu0 %v22
  %54 = vmatprep.subr.mxu0 0.0
  %55 = vmatpush1.msra.mxu0 %v23
  %56 = vmatprep.subr.mxu0 0.0
  %57 = vmatpush1.msra.mxu0 %v24
  %58 = vmatprep.subr.mxu0 0.0
  %59 = vmatpush1.msra.mxu0 %v25
  %60 = vmatprep.subr.mxu0 0.0
  %61 = vmatpush1.msra.mxu0 %v26
  %62 = vmatprep.subr.mxu0 0.0
  %63 = vmatpush1.msra.mxu0 %v27
  %64 = vmatprep.subr.mxu0 0.0
  %65 = vmatpush1.msra.mxu0 %v28
  %66 = vmatprep.subr.mxu0 0.0
  %67 = vmatpush1.msra.mxu0 %v29
  %68 = vmatprep.subr.mxu0 0.0
  %69 = vmatpush1.msra.mxu0 %v30
  %70 = vmatprep.subr.mxu0 0.0
  %71 = vmatpush1.msra.mxu0 0.0
  %72 = vmatprep.subr.mxu0 0.0
  %73 = vmatpush1.msra.mxu0 0.0
  %74 = vmatprep.subr.mxu0 0.0
  %75 = vmatpush1.msra.mxu0 0.0
  %76 = vmatprep.subr.mxu0 0.0
  %77 = vmatpush1.msra.mxu0 0.0
  %78 = vmatprep.subr.mxu0 0.0
  %79 = vmatpush1.msra.mxu0 0.0
  %80 = vmatprep.subr.mxu0 0.0
  %81 = vmatpush1.msra.mxu0 0.0
  %82 = vmatprep.subr.mxu0 0.0
  %83 = vmatpush1.msra.mxu0 0.0
  %84 = vmatprep.subr.mxu0 0.0
  %85 = vmatpush1.msra.mxu0 0.0
  %86 = vmatprep.subr.mxu0 0.0
  %87 = vmatpush1.msra.mxu0 0.0
  %88 = vmatprep.subr.mxu0 0.0
  %89 = vmatpush1.msra.mxu0 0.0
  %90 = vmatprep.subr.mxu0 0.0
  %91 = vmatpush1.msra.mxu0 0.0
  %92 = vmatprep.subr.mxu0 0.0
  %93 = vmatpush1.msra.mxu0 0.0
  %94 = vmatprep.subr.mxu0 0.0
  %95 = vmatpush1.msra.mxu0 0.0
  %96 = vmatprep.subr.mxu0 0.0
  %97 = vmatpush1.msra.mxu0 0.0
  %98 = vmatprep.subr.mxu0 0.0
  %99 = vmatpush1.msra.mxu0 0.0
  %100 = vmatprep.subr.mxu0 0.0
  %101 = vmatpush1.msra.mxu0 0.0
  %102 = vmatprep.mubr.f32.mxu0 0.0
  %103 = vmatmul.mubr.f32.gmra.mrb[0].mxu0 %v14
  %v104 = vpop.f32.mrb[0].mxu0
  %v105 = vadd.f32 %v36, %v104
  %v106 = vpop.f32.mrb[0].mxu0
  %107 = vdwg.mxu0
  %vm108 = vcmask 654336
  %109 = vst.msk [vmem:[%s3] sm:$0xff] %vm108, %v105
  // Predicated region
  $region14: #{per_forward.1} parent=0 // pred_check
    _
  $region15: #{per_forward.1} parent=0 // pred_check_branch
    %111 = sbr.rel (0) target = $region17
  $region16: #{per_forward.1} parent=0 // pred_region
    _
  $region17: #{per_forward.1} parent=0 // pred_fallthru
    _
  // Predicated region
  $region18: #{per_forward.1} parent=0 // pred_check
    _
  $region19: #{per_forward.1} parent=0 // pred_check_branch
    %113 = sbr.rel (0) target = $region21
  $region20: #{per_forward.1} parent=0 // pred_region
    _
  $region21: #{per_forward.1} parent=0 // pred_fallthru
    _

</llo_original>
